<compile_context>
chip_gen: v5e
topology: v5e:2x2
jax: 0.10.0
libtpu: 0.0.40
codegen_flags: <defaults>
</compile_context>

<pallas_src>
import jax
import jax.numpy as jnp
from jax.experimental import pallas as pl
from jax.experimental.pallas import tpu as pltpu


# ---------------------------------------------------------------------------
# Kernels
# ---------------------------------------------------------------------------
def _msigmoid_kernel_f32(x_ref, o_ref):
    # modified_sigmoid(x) = 1 / (1 + exp(-2x)) = 0.5 * tanh(x) + 0.5
    x = x_ref[...].astype(jnp.float32)
    o_ref[...] = (0.5 * jnp.tanh(x) + 0.5).astype(o_ref.dtype)


def _msigmoid_kernel_native(x_ref, o_ref):
    # bf16-native path for chips with bf16 VPU/EUP (v6e/v7x): no vpack/vunpack.
    x = x_ref[...]
    o_ref[...] = (0.5 * jnp.tanh(x) + 0.5).astype(o_ref.dtype)


# ---------------------------------------------------------------------------
# Per-generation tuning
# ---------------------------------------------------------------------------
def _chip_tuning():
    """Returns (target_block_bytes, vmem_limit_bytes, bf16_native_ok).

    v5e/v6e: 128 MiB physical VMEM -> 16 MiB blocks, 80 MiB scoped limit
    (double-buffered in+out = 64 MiB plus headroom).
    v7x / unknown: conservative 4 MiB blocks / 32 MiB limit (64 MiB per-TC
    VMEM on v7x; this config is safe on every generation).
    bf16-native compute only when the chip is positively identified as
    v6e/v7x (v5e has no bf16 VPU/EUP).
    """
    target_block_bytes = 4 * 1024 * 1024
    vmem_limit_bytes = 32 * 1024 * 1024
    bf16_native = False

    kind = ""
    try:
        kind = jax.devices()[0].device_kind.lower()
    except Exception:
        kind = ""

    vmem_cap = None
    try:
        vmem_cap = int(pltpu.get_tpu_info().vmem_capacity_bytes)
    except Exception:
        vmem_cap = None

    is_v5 = "v5" in kind
    is_v6 = "v6" in kind
    is_v7 = ("v7" in kind) or ("7x" in kind)

    if is_v5 or is_v6:
        target_block_bytes = 16 * 1024 * 1024
        vmem_limit_bytes = 80 * 1024 * 1024
    elif (not is_v7) and vmem_cap is not None and vmem_cap >= 112 * 1024 * 1024:
        # Unknown kind string but clearly a big-VMEM chip.
        target_block_bytes = 16 * 1024 * 1024
        vmem_limit_bytes = 80 * 1024 * 1024
    # else: keep the v7x-safe conservative defaults.

    if is_v6 or is_v7:
        bf16_native = True
    return target_block_bytes, vmem_limit_bytes, bf16_native


def _pick_lanes(n, sublane):
    """Widest lane-dense width that divides n, preferring rows % sublane == 0
    (full vreg sublane occupancy / unmasked stores), then rows >= sublane,
    then any exact divisor. Returns None if nothing from 128..8192 divides n."""
    candidates = (8192, 4096, 2048, 1024, 512, 256, 128)
    for cand in candidates:
        if n % cand == 0 and (n // cand) % sublane == 0:
            return cand
    for cand in candidates:
        if n % cand == 0 and (n // cand) >= sublane:
            return cand
    for cand in candidates:
        if n % cand == 0:
            return cand
    return None


# ---------------------------------------------------------------------------
# pallas_call wrapper over a (rows, lanes) slab
# ---------------------------------------------------------------------------
def _msigmoid_2d(x2d, *, target_block_bytes, vmem_limit_bytes, bf16_native):
    rows, lanes = x2d.shape
    dtype = x2d.dtype
    itemsize = jnp.dtype(dtype).itemsize
    sublane = max(8, 32 // itemsize)  # 8 for f32, 16 for bf16, 32 for 8-bit

    row_bytes = lanes * itemsize
    full_bytes = rows * row_bytes
    tile_rows = max(1, target_block_bytes // row_bytes)

    if tile_rows >= rows:
        # Whole array fits in one block. For mid/large arrays still force
        # >= 2 grid steps: v7x shards the "parallel" axis across its 2
        # TensorCores and it restores read/compute/write pipeline overlap
        # (harmless on single-TC v5e/v6e).
        if full_bytes > 2 * 1024 * 1024 and rows >= 2 * sublane:
            tile_rows = pl.cdiv(pl.cdiv(rows, 2), sublane) * sublane
        else:
            tile_rows = rows  # block == full array dims (always legal)
    else:
        tile_rows = max(sublane, (tile_rows // sublane) * sublane)

    grid = (pl.cdiv(rows, tile_rows),)
    kernel = (
        _msigmoid_kernel_native
        if (bf16_native and dtype == jnp.bfloat16)
        else _msigmoid_kernel_f32
    )

    n_elems = rows * lanes
    return pl.pallas_call(
        kernel,
        out_shape=jax.ShapeDtypeStruct((rows, lanes), dtype),
        grid_spec=pltpu.PrefetchScalarGridSpec(
            num_scalar_prefetch=0,
            grid=grid,
            in_specs=[pl.BlockSpec((tile_rows, lanes), lambda i: (i, 0))],
            out_specs=pl.BlockSpec((tile_rows, lanes), lambda i: (i, 0)),
        ),
        compiler_params=pltpu.CompilerParams(
            dimension_semantics=("parallel",),
            vmem_limit_bytes=vmem_limit_bytes,
        ),
        cost_estimate=pl.CostEstimate(
            flops=2 * n_elems,
            transcendentals=n_elems,
            bytes_accessed=2 * n_elems * itemsize,
        ),
    )(x2d)


# ---------------------------------------------------------------------------
# Public entry point
# ---------------------------------------------------------------------------
def msigmoid(x):
    """Applies modified sigmoid 1/(1+exp(-2x)) elementwise. Any shape/float dtype."""
    orig_shape = x.shape
    dtype = x.dtype
    n = x.size
    if n == 0:
        return x

    itemsize = jnp.dtype(dtype).itemsize
    sublane = max(8, 32 // itemsize)
    target_block_bytes, vmem_limit_bytes, bf16_native = _chip_tuning()

    # Ravel/reshape of a contiguous default-layout array lowers to a bitcast
    # (no relayout copy); the pallas_call sees a lane-dense 2D slab.
    x_flat = jnp.ravel(x)
    lanes = _pick_lanes(n, sublane)

    if lanes is not None:
        out2d = _msigmoid_2d(
            x_flat.reshape(n // lanes, lanes),
            target_block_bytes=target_block_bytes,
            vmem_limit_bytes=vmem_limit_bytes,
            bf16_native=bf16_native,
        )
        return out2d.reshape(orig_shape)

    # Fallback (n has no factor that is a multiple of 128): run the 128-aligned
    # prefix through the kernel and the (<128-element) tail through plain XLA.
    # Avoids the old pad + slice of the whole tensor (two extra HBM passes).
    n_main = (n // 128) * 128
    if n_main == 0:
        out_flat = (0.5 * jnp.tanh(x_flat.astype(jnp.float32)) + 0.5).astype(dtype)
    else:
        main = _msigmoid_2d(
            x_flat[:n_main].reshape(n_main // 128, 128),
            target_block_bytes=target_block_bytes,
            vmem_limit_bytes=vmem_limit_bytes,
            bf16_native=bf16_native,
        )
        tail = (0.5 * jnp.tanh(x_flat[n_main:].astype(jnp.float32)) + 0.5).astype(dtype)
        out_flat = jnp.concatenate([main.reshape(-1), tail])
    return out_flat.reshape(orig_shape)


if __name__ == "__main__":
    key = jax.random.PRNGKey(0)
    # Small NCHW-like activation consistent with the FC_MNIST usage.
    x = jax.random.normal(key, (2, 4, 16, 16), dtype=jnp.float32)

    out = jax.block_until_ready(msigmoid(x))
    ref = 1.0 / (1.0 + jnp.exp(-2.0 * x))
    assert out.shape == x.shape and out.dtype == x.dtype
    assert jnp.allclose(out, ref, atol=1e-6, rtol=1e-6)

    # Exercise the non-128-divisible fallback path (prefix kernel + XLA tail).
    key2 = jax.random.PRNGKey(1)
    x2 = jax.random.normal(key2, (7, 33), dtype=jnp.float32)
    out2 = jax.block_until_ready(msigmoid(x2))
    ref2 = 1.0 / (1.0 + jnp.exp(-2.0 * x2))
    assert out2.shape == x2.shape and out2.dtype == x2.dtype
    assert jnp.allclose(out2, ref2, atol=1e-6, rtol=1e-6)

    print("KERNEL_OK")
</pallas_src>

<mosaic_0001>
module attributes {stable_mosaic.version = 11 : i64} {
  func.func @_msigmoid_kernel_f32(%arg0: i32, %arg1: memref<8x256xf32, #tpu.memory_space<vmem>>, %arg2: memref<8x256xf32, #tpu.memory_space<vmem>>) attributes {dimension_semantics = [#tpu.dimension_semantics<parallel>], iteration_bounds = array<i64: 1>, scalar_prefetch = 0 : i64, scratch_operands = 0 : i64, tpu.core_type = #tpu.core_type<tc>, window_params = [{transform_indices = @transform_0, window_bounds = array<i64: 8, 256>}, {transform_indices = @transform_1, window_bounds = array<i64: 8, 256>}]} {
    %c0 = arith.constant 0 : index
    %c0_0 = arith.constant 0 : index
    %0 = vector.load %arg1[%c0, %c0_0] : memref<8x256xf32, #tpu.memory_space<vmem>>, vector<8x256xf32>
    %1 = math.tanh %0 : vector<8x256xf32>
    %cst = arith.constant 5.000000e-01 : f32
    %2 = vector.broadcast %cst : f32 to vector<8x256xf32>
    %3 = arith.mulf %2, %1 : vector<8x256xf32>
    %cst_1 = arith.constant 5.000000e-01 : f32
    %4 = vector.broadcast %cst_1 : f32 to vector<8x256xf32>
    %5 = arith.addf %3, %4 : vector<8x256xf32>
    %c0_2 = arith.constant 0 : index
    %c0_3 = arith.constant 0 : index
    %6 = vector.load %arg2[%c0_2, %c0_3] : memref<8x256xf32, #tpu.memory_space<vmem>>, vector<8x256xf32>
    tpu.vector_store %arg2[%c0_2, %c0_3], %5 {strides = array<i32>} : memref<8x256xf32, #tpu.memory_space<vmem>>, vector<8x256xf32>,
    return
  }
  func.func @transform_0(%arg0: i32) -> (i32, i32) {
    %c0_i32 = arith.constant 0 : i32
    %c0_i32_0 = arith.constant 0 : i32
    return %arg0, %c0_i32 : i32, i32
  }
  func.func @transform_1(%arg0: i32) -> (i32, i32) {
    %c0_i32 = arith.constant 0 : i32
    %c0_i32_0 = arith.constant 0 : i32
    return %arg0, %c0_i32 : i32, i32
  }
}

</mosaic_0001>

<llo_original>
// kernel: tpu_custom_call.1
$region0: #{tpu_custom_call.1}
  #allocation0 [shape = 'u32[]', space=smem, size = 0x4, offset = 0x4, fixed_abs, tag = 'smem constant byte address 0x4 - core index']
  #allocation1 [shape = 'u32[72,128]{1,0:T(1,128)}', space=vmem, size = 0x9000, scoped, tag = 'internal scratch']
  %s0 = inlined_call_operand.hbm [shape: f32[8,256], index: 0, kind: input, shape index: {}]
  %s1 = inlined_call_operand.hbm [shape: f32[8,256], index: 1, kind: output, shape index: {}]
  %s2 = sld [smem:[#allocation0]]
  $region18: #{tpu_custom_call.1} parent=0
    _
  %s4 = ssub.s32 1, %s2
  %s5 = scalar_select 0, %s4, %s2
  $region1: #{tpu_custom_call.1} parent=0
    #allocation2 [shape = 'u8[8192]{0}', space=vmem, size = 0x2000, scoped, tag = 'input window, operand 0, single buffered']
    #allocation3 [shape = 's32[1]{0}', space=sflag, size = 0x4, scoped, tag = 'scoped memory for tpu_custom_call.1']
    #allocation4 [shape = 's32[1]{0}', space=sflag, size = 0x4, scoped, tag = 'scoped memory for tpu_custom_call.1']
    #allocation5 [shape = 'u8[8192]{0}', space=vmem, size = 0x2000, scoped, tag = 'output window, operand 0, single buffered']
    %6 = vsyncpa [#allocation3], 0
    %7 = vsyncpa [#allocation4], 0
    // Predicated region
    $region2: #{tpu_custom_call.1} parent=1 // pred_check
      _
    $region3: #{tpu_custom_call.1} parent=1 // pred_check_branch
      %9 = sbr.rel (0) target = $region5
    $region4: #{tpu_custom_call.1} parent=1 // pred_region
      %11 = vsyncadd [#allocation3], 0
      %s13 = sshll.u32 %s0, 4
      %s14 = int_to_ptr.hbm [resolvable:$true] %s13
      %s15 = sshll.u32 [#allocation2], 4
      %s16 = int_to_ptr.vmem [resolvable:$true] %s15
      %18 = dma.hbm_to_vmem [thread:$0]  %s14, 256, %s16, [#allocation3]
    $region5: #{tpu_custom_call.1} parent=1 // pred_fallthru
      _
    // Predicated region
    $region6: #{tpu_custom_call.1} parent=1 // pred_check
      _
    $region7: #{tpu_custom_call.1} parent=1 // pred_check_branch
      %20 = sbr.rel (0) target = $region9
    $region8: #{tpu_custom_call.1} parent=1 // pred_region
      %22 = dma.done [#allocation3], 256
    $region9: #{tpu_custom_call.1} parent=1 // pred_fallthru
      _
    %v23 = vld [vmem:[#allocation2] sm:$0xff]
    %v24 = vld [vmem:[#allocation2 + $0x8] sm:$0xff]
    %v25 = vtanh.pop %v23
    %v26 = vtanh.pop %v24
    %v27 = vmul.f32 %v25, 0.5
    %v28 = vmul.f32 %v26, 0.5
    %v29 = vadd.f32 %v27, 0.5
    %v30 = vadd.f32 %v28, 0.5
    %31 = vst [vmem:[#allocation5] sm:$0xff] %v29
    %32 = vst [vmem:[#allocation5 + $0x8] sm:$0xff] %v30
    // Predicated region
    $region10: #{tpu_custom_call.1} parent=1 // pred_check
      _
    $region11: #{tpu_custom_call.1} parent=1 // pred_check_branch
      %34 = sbr.rel (0) target = $region13
    $region12: #{tpu_custom_call.1} parent=1 // pred_region
      %36 = vsyncadd [#allocation4], 0
      %s38 = sshll.u32 [#allocation5], 4
      %s39 = int_to_ptr.vmem [resolvable:$true] %s38
      %s40 = sshll.u32 %s1, 4
      %s41 = int_to_ptr.hbm [resolvable:$true] %s40
      %43 = dma.vmem_to_hbm [thread:$0]  %s39, 256, %s41, [#allocation4]
    $region13: #{tpu_custom_call.1} parent=1 // pred_fallthru
      _
    // Predicated region
    $region14: #{tpu_custom_call.1} parent=1 // pred_check
      _
    $region15: #{tpu_custom_call.1} parent=1 // pred_check_branch
      %45 = sbr.rel (0) target = $region17
    $region16: #{tpu_custom_call.1} parent=1 // pred_region
      %47 = dma.done [#allocation4], 256
    $region17: #{tpu_custom_call.1} parent=1 // pred_fallthru
      _
    %48 = vsyncpa [#allocation3], 1
    %49 = vsyncpa [#allocation4], 1

</llo_original>
